<compile_context>
chip_gen: v6e
topology: v6e:2x2x1
jax: 0.10.0
libtpu: 0.0.40
codegen_flags: <defaults>
</compile_context>

<pallas_src>
import jax
import jax.numpy as jnp
from jax.experimental import pallas as pl
from jax.experimental.pallas import tpu as pltpu

LANE = 128  # lane-dense width for the padded final layer / output


def _round_up(n, m):
    return ((n + m - 1) // m) * m


def mlp_kernel(x_ref, w1_ref, b1_ref, w2_ref, b2_ref, w3_ref, b3_ref,
               w4_ref, b4_ref, o_ref):
    # Cast the f32 input tile to bf16 on-chip (no separate XLA convert pass over x in HBM).
    x = x_ref[...].astype(jnp.bfloat16)
    h = jnp.dot(x, w1_ref[...], preferred_element_type=jnp.float32) + b1_ref[...]
    h = jnp.maximum(h.astype(jnp.bfloat16), 0)   # ReLU on packed bf16 vregs
    h = jnp.dot(h, w2_ref[...], preferred_element_type=jnp.float32) + b2_ref[...]
    h = jnp.maximum(h.astype(jnp.bfloat16), 0)
    h = jnp.dot(h, w3_ref[...], preferred_element_type=jnp.float32) + b3_ref[...]
    h = jnp.maximum(h.astype(jnp.bfloat16), 0)
    # Final layer zero-padded to 128 output lanes -> unmasked lane-dense bf16 stores.
    h = jnp.dot(h, w4_ref[...], preferred_element_type=jnp.float32) + b4_ref[...]
    o_ref[...] = h.astype(o_ref.dtype)


def classifier_forward(x, params, tile_b_max=2048, slice_output=True):
    """x: [B, 128] float32, params: dict of (w, b) per layer.

    Returns [B, 10] float32 (slice_output=True) or the padded [Bp, 128] bf16 logits buffer.
    """
    B, D = x.shape
    assert D == 128

    # Tile choice: bounded padding, tile a multiple of 16 (bf16 sublane quantum), and at
    # least 2 grid steps for mid/large batches so v7x megacore keeps both cores busy.
    n_tiles = pl.cdiv(B, tile_b_max)
    if n_tiles == 1 and B >= 512:
        n_tiles = 2
    tile_b = _round_up(pl.cdiv(B, n_tiles), 16)
    Bp = _round_up(B, tile_b)

    # Only pad when the batch is ragged w.r.t. the tile; x stays f32 (kernel casts on-chip).
    xp = x if Bp == B else jnp.pad(x, ((0, Bp - B), (0, 0)))

    # bf16 weight operands for the MXU (tiny: ~160 KiB total); biases stay f32 for the VPU add.
    w1 = params["w1"].astype(jnp.bfloat16)
    w2 = params["w2"].astype(jnp.bfloat16)
    w3 = params["w3"].astype(jnp.bfloat16)
    w4 = jnp.pad(params["w4"], ((0, 0), (0, LANE - 10))).astype(jnp.bfloat16)
    b1 = params["b1"].astype(jnp.float32)
    b2 = params["b2"].astype(jnp.float32)
    b3 = params["b3"].astype(jnp.float32)
    b4 = jnp.pad(params["b4"], ((0, 0), (0, LANE - 10))).astype(jnp.float32)

    args = (xp, w1, b1, w2, b2, w3, b3, w4, b4)
    grid = (Bp // tile_b,)

    def const_spec(a):
        # Full-array block with a constant index map: fetched once, VMEM-resident across
        # all batch tiles (no per-step weight re-DMA).
        return pl.BlockSpec(a.shape, lambda i: (0, 0))

    in_specs = [pl.BlockSpec((tile_b, 128), lambda i: (i, 0))] + [
        const_spec(a) for a in args[1:]
    ]
    out_specs = pl.BlockSpec((tile_b, LANE), lambda i: (i, 0))

    flops = 2 * Bp * (128 * 256 + 256 * 128 + 128 * 64 + 64 * LANE)
    bytes_accessed = int(
        Bp * 128 * 4 +              # f32 input read
        Bp * LANE * 2 +             # bf16 output write
        sum(int(a.size) * a.dtype.itemsize for a in args[1:]))

    out = pl.pallas_call(
        mlp_kernel,
        out_shape=jax.ShapeDtypeStruct((Bp, LANE), jnp.bfloat16),
        grid=grid,
        in_specs=in_specs,
        out_specs=out_specs,
        compiler_params=pltpu.CompilerParams(
            dimension_semantics=("parallel",)),  # megacore split on v7x, no-op on v5e/v6e
        cost_estimate=pl.CostEstimate(flops=flops, transcendentals=0,
                                      bytes_accessed=bytes_accessed),
    )(*args)

    if not slice_output:
        return out                    # padded bf16 [Bp, 128], no extra HBM pass
    # Contract with the PyTorch module: [B, 10] logits. This slice/cast is one small extra
    # XLA pass over the (now bf16, i.e. half-size) output buffer.
    return out[:B, :10].astype(jnp.float32)


def init_params(key):
    """Deterministic parameter init mimicking nn.Linear default (uniform +-1/sqrt(fan_in)).

    Weights are stored [in, out] (transpose of nn.Linear's [out, in]); biases as [1, out].
    """
    dims = [(128, 256), (256, 128), (128, 64), (64, 10)]
    params = {}
    for i, (fan_in, fan_out) in enumerate(dims, start=1):
        key, kw, kb = jax.random.split(key, 3)
        bound = 1.0 / jnp.sqrt(fan_in)
        params[f"w{i}"] = jax.random.uniform(kw, (fan_in, fan_out), jnp.float32,
                                             minval=-bound, maxval=bound)
        params[f"b{i}"] = jax.random.uniform(kb, (1, fan_out), jnp.float32,
                                             minval=-bound, maxval=bound)
    return params


def reference_forward(x, p):
    h = jnp.maximum(x @ p["w1"] + p["b1"], 0.0)
    h = jnp.maximum(h @ p["w2"] + p["b2"], 0.0)
    h = jnp.maximum(h @ p["w3"] + p["b3"], 0.0)
    return h @ p["w4"] + p["b4"]


# TODO(synk): fit()/decision_function_loader() (Adam training loop, DataLoader iteration,
# argmax-to-numpy) are host-side utilities with no Pallas equivalent; only forward() is ported.

if __name__ == "__main__":
    key = jax.random.PRNGKey(0)
    key, kx = jax.random.split(key)
    params = init_params(key)

    fwd = jax.jit(classifier_forward, static_argnames=("tile_b_max", "slice_output"))

    # Case 1: tiny batch (single tile, batch padded 8 -> 16 rows inside the wrapper).
    B1 = 8
    x1 = jax.random.normal(kx, (B1, 128), jnp.float32)
    out1 = jax.block_until_ready(fwd(x1, params))
    ref1 = reference_forward(x1, params)
    assert out1.shape == (B1, 10)
    assert jnp.allclose(out1, ref1, atol=1e-1, rtol=5e-2), (
        f"case1 max abs diff = {float(jnp.max(jnp.abs(out1 - ref1)))}")

    # Case 2: batch not a multiple of the tile; small tile_b_max forces a multi-step grid
    # plus a padded final tile (exercises the padded-grid path the review flagged).
    B2 = 40
    x2 = jax.random.normal(jax.random.fold_in(kx, 1), (B2, 128), jnp.float32)
    out2 = jax.block_until_ready(fwd(x2, params, tile_b_max=16))
    ref2 = reference_forward(x2, params)
    assert out2.shape == (B2, 10)
    assert jnp.allclose(out2, ref2, atol=1e-1, rtol=5e-2), (
        f"case2 max abs diff = {float(jnp.max(jnp.abs(out2 - ref2)))}")

    print("KERNEL_OK")
</pallas_src>

<mosaic_0001>
module attributes {stable_mosaic.version = 11 : i64} {
  func.func @mlp_kernel(%arg0: i32, %arg1: memref<16x128xf32, #tpu.memory_space<vmem>>, %arg2: memref<128x256xbf16, #tpu.memory_space<vmem>>, %arg3: memref<1x256xf32, #tpu.memory_space<vmem>>, %arg4: memref<256x128xbf16, #tpu.memory_space<vmem>>, %arg5: memref<1x128xf32, #tpu.memory_space<vmem>>, %arg6: memref<128x64xbf16, #tpu.memory_space<vmem>>, %arg7: memref<1x64xf32, #tpu.memory_space<vmem>>, %arg8: memref<64x128xbf16, #tpu.memory_space<vmem>>, %arg9: memref<1x128xf32, #tpu.memory_space<vmem>>, %arg10: memref<16x128xbf16, #tpu.memory_space<vmem>>) attributes {dimension_semantics = [#tpu.dimension_semantics<parallel>], iteration_bounds = array<i64: 1>, scalar_prefetch = 0 : i64, scratch_operands = 0 : i64, tpu.core_type = #tpu.core_type<tc>, window_params = [{transform_indices = @transform_0, window_bounds = array<i64: 16, 128>}, {pipeline_mode = #tpu.pipeline_mode<synchronous>, transform_indices = @transform_1, window_bounds = array<i64: 128, 256>}, {pipeline_mode = #tpu.pipeline_mode<synchronous>, transform_indices = @transform_2, window_bounds = array<i64: 1, 256>}, {pipeline_mode = #tpu.pipeline_mode<synchronous>, transform_indices = @transform_3, window_bounds = array<i64: 256, 128>}, {pipeline_mode = #tpu.pipeline_mode<synchronous>, transform_indices = @transform_4, window_bounds = array<i64: 1, 128>}, {pipeline_mode = #tpu.pipeline_mode<synchronous>, transform_indices = @transform_5, window_bounds = array<i64: 128, 64>}, {pipeline_mode = #tpu.pipeline_mode<synchronous>, transform_indices = @transform_6, window_bounds = array<i64: 1, 64>}, {pipeline_mode = #tpu.pipeline_mode<synchronous>, transform_indices = @transform_7, window_bounds = array<i64: 64, 128>}, {pipeline_mode = #tpu.pipeline_mode<synchronous>, transform_indices = @transform_8, window_bounds = array<i64: 1, 128>}, {transform_indices = @transform_9, window_bounds = array<i64: 16, 128>}]} {
    %c0 = arith.constant 0 : index
    %c0_0 = arith.constant 0 : index
    %0 = vector.load %arg1[%c0, %c0_0] : memref<16x128xf32, #tpu.memory_space<vmem>>, vector<16x128xf32>
    %1 = arith.truncf %0 : vector<16x128xf32> to vector<16x128xbf16>
    %c0_1 = arith.constant 0 : index
    %c0_2 = arith.constant 0 : index
    %2 = vector.load %arg2[%c0_1, %c0_2] : memref<128x256xbf16, #tpu.memory_space<vmem>>, vector<128x256xbf16>
    %cst = arith.constant dense<0.000000e+00> : vector<16x256xf32>
    %3 = tpu.matmul %1, %2, %cst {dimension_numbers = #tpu.dot_dimension_numbers<[1], [0], [0], [1], [0, 0, 1, 1], [], []>} : vector<16x128xbf16>, vector<128x256xbf16>, vector<16x256xf32> -> vector<16x256xf32>
    %c0_3 = arith.constant 0 : index
    %c0_4 = arith.constant 0 : index
    %4 = vector.load %arg3[%c0_3, %c0_4] : memref<1x256xf32, #tpu.memory_space<vmem>>, vector<1x256xf32>
    %5 = vector.broadcast %4 : vector<1x256xf32> to vector<16x256xf32>
    %6 = arith.addf %3, %5 : vector<16x256xf32>
    %7 = arith.truncf %6 : vector<16x256xf32> to vector<16x256xbf16>
    %cst_5 = arith.constant 0.000000e+00 : bf16
    %8 = vector.broadcast %cst_5 : bf16 to vector<16x256xbf16>
    %9 = arith.maximumf %7, %8 : vector<16x256xbf16>
    %c0_6 = arith.constant 0 : index
    %c0_7 = arith.constant 0 : index
    %10 = vector.load %arg4[%c0_6, %c0_7] : memref<256x128xbf16, #tpu.memory_space<vmem>>, vector<256x128xbf16>
    %cst_8 = arith.constant dense<0.000000e+00> : vector<16x128xf32>
    %11 = tpu.matmul %9, %10, %cst_8 {dimension_numbers = #tpu.dot_dimension_numbers<[1], [0], [0], [1], [0, 0, 1, 1], [], []>} : vector<16x256xbf16>, vector<256x128xbf16>, vector<16x128xf32> -> vector<16x128xf32>
    %c0_9 = arith.constant 0 : index
    %c0_10 = arith.constant 0 : index
    %12 = vector.load %arg5[%c0_9, %c0_10] : memref<1x128xf32, #tpu.memory_space<vmem>>, vector<1x128xf32>
    %13 = vector.broadcast %12 : vector<1x128xf32> to vector<16x128xf32>
    %14 = arith.addf %11, %13 : vector<16x128xf32>
    %15 = arith.truncf %14 : vector<16x128xf32> to vector<16x128xbf16>
    %cst_11 = arith.constant 0.000000e+00 : bf16
    %16 = vector.broadcast %cst_11 : bf16 to vector<16x128xbf16>
    %17 = arith.maximumf %15, %16 : vector<16x128xbf16>
    %c0_12 = arith.constant 0 : index
    %c0_13 = arith.constant 0 : index
    %18 = vector.load %arg6[%c0_12, %c0_13] : memref<128x64xbf16, #tpu.memory_space<vmem>>, vector<128x64xbf16>
    %cst_14 = arith.constant dense<0.000000e+00> : vector<16x64xf32>
    %19 = tpu.matmul %17, %18, %cst_14 {dimension_numbers = #tpu.dot_dimension_numbers<[1], [0], [0], [1], [0, 0, 1, 1], [], []>} : vector<16x128xbf16>, vector<128x64xbf16>, vector<16x64xf32> -> vector<16x64xf32>
    %c0_15 = arith.constant 0 : index
    %c0_16 = arith.constant 0 : index
    %20 = vector.load %arg7[%c0_15, %c0_16] : memref<1x64xf32, #tpu.memory_space<vmem>>, vector<1x64xf32>
    %21 = vector.broadcast %20 : vector<1x64xf32> to vector<16x64xf32>
    %22 = arith.addf %19, %21 : vector<16x64xf32>
    %23 = arith.truncf %22 : vector<16x64xf32> to vector<16x64xbf16>
    %cst_17 = arith.constant 0.000000e+00 : bf16
    %24 = vector.broadcast %cst_17 : bf16 to vector<16x64xbf16>
    %25 = arith.maximumf %23, %24 : vector<16x64xbf16>
    %c0_18 = arith.constant 0 : index
    %c0_19 = arith.constant 0 : index
    %26 = vector.load %arg8[%c0_18, %c0_19] : memref<64x128xbf16, #tpu.memory_space<vmem>>, vector<64x128xbf16>
    %cst_20 = arith.constant dense<0.000000e+00> : vector<16x128xf32>
    %27 = tpu.matmul %25, %26, %cst_20 {dimension_numbers = #tpu.dot_dimension_numbers<[1], [0], [0], [1], [0, 0, 1, 1], [], []>} : vector<16x64xbf16>, vector<64x128xbf16>, vector<16x128xf32> -> vector<16x128xf32>
    %c0_21 = arith.constant 0 : index
    %c0_22 = arith.constant 0 : index
    %28 = vector.load %arg9[%c0_21, %c0_22] : memref<1x128xf32, #tpu.memory_space<vmem>>, vector<1x128xf32>
    %29 = vector.broadcast %28 : vector<1x128xf32> to vector<16x128xf32>
    %30 = arith.addf %27, %29 : vector<16x128xf32>
    %31 = arith.truncf %30 : vector<16x128xf32> to vector<16x128xbf16>
    %c0_23 = arith.constant 0 : index
    %c0_24 = arith.constant 0 : index
    %32 = vector.load %arg10[%c0_23, %c0_24] : memref<16x128xbf16, #tpu.memory_space<vmem>>, vector<16x128xbf16>
    tpu.vector_store %arg10[%c0_23, %c0_24], %31 {strides = array<i32>} : memref<16x128xbf16, #tpu.memory_space<vmem>>, vector<16x128xbf16>,
    return
  }
  func.func @transform_0(%arg0: i32) -> (i32, i32) {
    %c0_i32 = arith.constant 0 : i32
    %c0_i32_0 = arith.constant 0 : i32
    return %arg0, %c0_i32 : i32, i32
  }
  func.func @transform_1(%arg0: i32) -> (i32, i32) {
    %c0_i32 = arith.constant 0 : i32
    %c0_i32_0 = arith.constant 0 : i32
    %c0_i32_1 = arith.constant 0 : i32
    return %c0_i32, %c0_i32_0 : i32, i32
  }
  func.func @transform_2(%arg0: i32) -> (i32, i32) {
    %c0_i32 = arith.constant 0 : i32
    %c0_i32_0 = arith.constant 0 : i32
    %c0_i32_1 = arith.constant 0 : i32
    return %c0_i32, %c0_i32_0 : i32, i32
  }
  func.func @transform_3(%arg0: i32) -> (i32, i32) {
    %c0_i32 = arith.constant 0 : i32
    %c0_i32_0 = arith.constant 0 : i32
    %c0_i32_1 = arith.constant 0 : i32
    return %c0_i32, %c0_i32_0 : i32, i32
  }
  func.func @transform_4(%arg0: i32) -> (i32, i32) {
    %c0_i32 = arith.constant 0 : i32
    %c0_i32_0 = arith.constant 0 : i32
    %c0_i32_1 = arith.constant 0 : i32
    return %c0_i32, %c0_i32_0 : i32, i32
  }
  func.func @transform_5(%arg0: i32) -> (i32, i32) {
    %c0_i32 = arith.constant 0 : i32
    %c0_i32_0 = arith.constant 0 : i32
    %c0_i32_1 = arith.constant 0 : i32
    return %c0_i32, %c0_i32_0 : i32, i32
  }
  func.func @transform_6(%arg0: i32) -> (i32, i32) {
    %c0_i32 = arith.constant 0 : i32
    %c0_i32_0 = arith.constant 0 : i32
    %c0_i32_1 = arith.constant 0 : i32
    return %c0_i32, %c0_i32_0 : i32, i32
  }
  func.func @transform_7(%arg0: i32) -> (i32, i32) {
    %c0_i32 = arith.constant 0 : i32
    %c0_i32_0 = arith.constant 0 : i32
    %c0_i32_1 = arith.constant 0 : i32
    return %c0_i32, %c0_i32_0 : i32, i32
  }
  func.func @transform_8(%arg0: i32) -> (i32, i32) {
    %c0_i32 = arith.constant 0 : i32
    %c0_i32_0 = arith.constant 0 : i32
    %c0_i32_1 = arith.constant 0 : i32
    return %c0_i32, %c0_i32_0 : i32, i32
  }
  func.func @transform_9(%arg0: i32) -> (i32, i32) {
    %c0_i32 = arith.constant 0 : i32
    %c0_i32_0 = arith.constant 0 : i32
    return %arg0, %c0_i32 : i32, i32
  }
}

</mosaic_0001>

<llo_original>
// kernel: classifier_forward.1
$region0: #{classifier_forward.1}
  #allocation0 [shape = 'u32[]', space=smem, size = 0x4, offset = 0x4, fixed_abs, tag = 'smem constant byte address 0x4 - core index']
  #allocation1 [shape = 'u32[144,128]{1,0:T(1,128)}', space=vmem, size = 0x12000, scoped, tag = 'internal scratch']
  %s0 = inlined_call_operand.vmem [shape: f32[16,128], index: 0, kind: input, shape index: {}]
  %s1 = inlined_call_operand.vmem [shape: bf16[128,256], index: 1, kind: input, shape index: {}]
  %s2 = inlined_call_operand.vmem [shape: f32[1,256], index: 2, kind: input, shape index: {}]
  %s3 = inlined_call_operand.vmem [shape: bf16[256,128], index: 3, kind: input, shape index: {}]
  %s4 = inlined_call_operand.vmem [shape: f32[1,128], index: 4, kind: input, shape index: {}]
  %s5 = inlined_call_operand.vmem [shape: bf16[128,64], index: 5, kind: input, shape index: {}]
  %s6 = inlined_call_operand.vmem [shape: f32[1,64], index: 6, kind: input, shape index: {}]
  %s7 = inlined_call_operand.vmem [shape: bf16[64,128], index: 7, kind: input, shape index: {}]
  %s8 = inlined_call_operand.vmem [shape: f32[1,128], index: 8, kind: input, shape index: {}]
  %s9 = inlined_call_operand.vmem [shape: bf16[16,128], index: 9, kind: output, shape index: {}]
  %s10 = sld [smem:[#allocation0]]
  $region46: #{classifier_forward.1} parent=0
    _
  %s12 = ssub.s32 1, %s10
  %s13 = scalar_select 0, %s12, %s10
  // Predicated region
  $region2: #{classifier_forward.1} parent=0 // pred_check
    _
  $region3: #{classifier_forward.1} parent=0 // pred_check_branch
    %15 = sbr.rel (0) target = $region5
  $region4: #{classifier_forward.1} parent=0 // pred_region
    _
  $region5: #{classifier_forward.1} parent=0 // pred_fallthru
    _
  // Predicated region
  $region6: #{classifier_forward.1} parent=0 // pred_check
    _
  $region7: #{classifier_forward.1} parent=0 // pred_check_branch
    %17 = sbr.rel (0) target = $region9
  $region8: #{classifier_forward.1} parent=0 // pred_region
    _
  $region9: #{classifier_forward.1} parent=0 // pred_fallthru
    _
  // Predicated region
  $region10: #{classifier_forward.1} parent=0 // pred_check
    _
  $region11: #{classifier_forward.1} parent=0 // pred_check_branch
    %19 = sbr.rel (0) target = $region13
  $region12: #{classifier_forward.1} parent=0 // pred_region
    _
  $region13: #{classifier_forward.1} parent=0 // pred_fallthru
    _
  // Predicated region
  $region14: #{classifier_forward.1} parent=0 // pred_check
    _
  $region15: #{classifier_forward.1} parent=0 // pred_check_branch
    %21 = sbr.rel (0) target = $region17
  $region16: #{classifier_forward.1} parent=0 // pred_region
    _
  $region17: #{classifier_forward.1} parent=0 // pred_fallthru
    _
  // Predicated region
  $region18: #{classifier_forward.1} parent=0 // pred_check
    _
  $region19: #{classifier_forward.1} parent=0 // pred_check_branch
    %23 = sbr.rel (0) target = $region21
  $region20: #{classifier_forward.1} parent=0 // pred_region
    _
  $region21: #{classifier_forward.1} parent=0 // pred_fallthru
    _
  // Predicated region
  $region22: #{classifier_forward.1} parent=0 // pred_check
    _
  $region23: #{classifier_forward.1} parent=0 // pred_check_branch
    %25 = sbr.rel (0) target = $region25
  $region24: #{classifier_forward.1} parent=0 // pred_region
    _
  $region25: #{classifier_forward.1} parent=0 // pred_fallthru
    _
  // Predicated region
  $region26: #{classifier_forward.1} parent=0 // pred_check
    _
  $region27: #{classifier_forward.1} parent=0 // pred_check_branch
    %27 = sbr.rel (0) target = $region29
  $region28: #{classifier_forward.1} parent=0 // pred_region
    _
  $region29: #{classifier_forward.1} parent=0 // pred_fallthru
    _
  // Predicated region
  $region30: #{classifier_forward.1} parent=0 // pred_check
    _
  $region31: #{classifier_forward.1} parent=0 // pred_check_branch
    %29 = sbr.rel (0) target = $region33
  $region32: #{classifier_forward.1} parent=0 // pred_region
    _
  $region33: #{classifier_forward.1} parent=0 // pred_fallthru
    _
  // Predicated region
  $region34: #{classifier_forward.1} parent=0 // pred_check
    _
  $region35: #{classifier_forward.1} parent=0 // pred_check_branch
    %31 = sbr.rel (0) target = $region37
  $region36: #{classifier_forward.1} parent=0 // pred_region
    _
  $region37: #{classifier_forward.1} parent=0 // pred_fallthru
    _
  %v33 = vld [vmem:[%s0] sm:$0xff]
  %v34 = vld [vmem:[%s0 + $0x8] sm:$0xff]
  %v35 = vpack.c.bf16 %v34, %v33
  %v36 = vld [vmem:[%s1] sm:$0xff]
  %v37 = vld [vmem:[%s1 + $0x8] sm:$0xff]
  %v38 = vld [vmem:[%s1 + $0x10] sm:$0xff]
  %v39 = vld [vmem:[%s1 + $0x18] sm:$0xff]
  %v40 = vld [vmem:[%s1 + $0x20] sm:$0xff]
  %v41 = vld [vmem:[%s1 + $0x28] sm:$0xff]
  %v42 = vld [vmem:[%s1 + $0x30] sm:$0xff]
  %v43 = vld [vmem:[%s1 + $0x38] sm:$0xff]
  %v44 = vld [vmem:[%s1 + $0x40] sm:$0xff]
  %v45 = vld [vmem:[%s1 + $0x48] sm:$0xff]
  %v46 = vld [vmem:[%s1 + $0x50] sm:$0xff]
  %v47 = vld [vmem:[%s1 + $0x58] sm:$0xff]
  %v48 = vld [vmem:[%s1 + $0x60] sm:$0xff]
  %v49 = vld [vmem:[%s1 + $0x68] sm:$0xff]
  %v50 = vld [vmem:[%s1 + $0x70] sm:$0xff]
  %v51 = vld [vmem:[%s1 + $0x78] sm:$0xff]
  %v52 = vld [vmem:[%s2] sm:$0x3]
  %v54 = vlaneseq
  %v55 = vshrl.u32 %v54, 7
  %v56 = vsub.s32 0, %v55
  %v57 = vrot.slane %v52, %v56
  %v58 = vlaneseq
  %v59 = vshrl.u32 %v58, 7
  %v60 = vsub.s32 1, %v59
  %v61 = vrot.slane %v52, %v60
  %v80 = vunpack.c.l.b16 %v36
  %v81 = vunpack.c.h.b16 %v36
  %v82 = vunpack.c.l.b16 %v37
  %v83 = vunpack.c.h.b16 %v37
  %v84 = vunpack.c.l.b16 %v38
  %v85 = vunpack.c.h.b16 %v38
  %v86 = vunpack.c.l.b16 %v39
  %v87 = vunpack.c.h.b16 %v39
  %v88 = vunpack.c.l.b16 %v40
  %v89 = vunpack.c.h.b16 %v40
  %v90 = vunpack.c.l.b16 %v41
  %v91 = vunpack.c.h.b16 %v41
  %v92 = vunpack.c.l.b16 %v42
  %v93 = vunpack.c.h.b16 %v42
  %v94 = vunpack.c.l.b16 %v43
  %v95 = vunpack.c.h.b16 %v43
  %v96 = vunpack.c.l.b16 %v44
  %v97 = vunpack.c.h.b16 %v44
  %v98 = vunpack.c.l.b16 %v45
  %v99 = vunpack.c.h.b16 %v45
  %v100 = vunpack.c.l.b16 %v46
  %v101 = vunpack.c.h.b16 %v46
  %v102 = vunpack.c.l.b16 %v47
  %v103 = vunpack.c.h.b16 %v47
  %v104 = vunpack.c.l.b16 %v48
  %v105 = vunpack.c.h.b16 %v48
  %v106 = vunpack.c.l.b16 %v49
  %v107 = vunpack.c.h.b16 %v49
  %v108 = vunpack.c.l.b16 %v50
  %v109 = vunpack.c.h.b16 %v50
  %v110 = vunpack.c.l.b16 %v51
  %v111 = vunpack.c.h.b16 %v51
  %v112 = vpack.c.b16 %v82, %v80
  %v113 = vpack.c.b16 %v83, %v81
  %v114 = vpack.c.b16 %v86, %v84
  %v115 = vpack.c.b16 %v87, %v85
  %v116 = vpack.c.b16 %v90, %v88
  %v117 = vpack.c.b16 %v91, %v89
  %v118 = vpack.c.b16 %v94, %v92
  %v119 = vpack.c.b16 %v95, %v93
  %v120 = vpack.c.b16 %v98, %v96
  %v121 = vpack.c.b16 %v99, %v97
  %v122 = vpack.c.b16 %v102, %v100
  %v123 = vpack.c.b16 %v103, %v101
  %v124 = vpack.c.b16 %v106, %v104
  %v125 = vpack.c.b16 %v107, %v105
  %v126 = vpack.c.b16 %v110, %v108
  %v127 = vpack.c.b16 %v111, %v109
  %144 = vmatprep.subr.bf16.mxu0 %v127
  %145 = vmatpush1.bf16.msra.mxu0 %v126
  %146 = vmatprep.subr.bf16.mxu0 %v125
  %147 = vmatpush1.bf16.msra.mxu0 %v124
  %148 = vmatprep.subr.bf16.mxu0 %v123
  %149 = vmatpush1.bf16.msra.mxu0 %v122
  %150 = vmatprep.subr.bf16.mxu0 %v121
  %151 = vmatpush1.bf16.msra.mxu0 %v120
  %152 = vmatprep.subr.bf16.mxu0 %v119
  %153 = vmatpush1.bf16.msra.mxu0 %v118
  %154 = vmatprep.subr.bf16.mxu0 %v117
  %155 = vmatpush1.bf16.msra.mxu0 %v116
  %156 = vmatprep.subr.bf16.mxu0 %v115
  %157 = vmatpush1.bf16.msra.mxu0 %v114
  %158 = vmatprep.subr.bf16.mxu0 %v113
  %159 = vmatpush1.bf16.msra.mxu0 %v112
  %160 = vmatprep.subr.bf16.mxu0 0
  %161 = vmatpush2.bf16.msra.mxu0 0
  %162 = vmatprep.subr.bf16.mxu0 0
  %163 = vmatpush2.bf16.msra.mxu0 0
  %164 = vmatprep.subr.bf16.mxu0 0
  %165 = vmatpush2.bf16.msra.mxu0 0
  %166 = vmatprep.subr.bf16.mxu0 0
  %167 = vmatpush2.bf16.msra.mxu0 0
  %168 = vmatprep.subr.bf16.mxu0 0
  %169 = vmatpush2.bf16.msra.mxu0 0
  %170 = vmatprep.subr.bf16.mxu0 0
  %171 = vmatpush2.bf16.msra.mxu0 0
  %172 = vmatprep.subr.bf16.mxu0 0
  %173 = vmatpush2.bf16.msra.mxu0 0
  %174 = vmatprep.subr.bf16.mxu0 0
  %175 = vmatpush2.bf16.msra.mxu0 0
  %176 = vmatprep.mubr.bf16.mxu0 0
  %177 = vmatmul.mubr.bf16.gmra.mxu0 %v35
  %v178 = vpop.f32.mrf.mxu0
  %v179 = vadd.f32 %v57, %v178
  %v180 = vpop.f32.mrf.mxu0
  %v181 = vadd.f32 %v61, %v180
  %v182 = vpop.f32.mrf.mxu0
  %v183 = vadd.f32 %v57, %v182
  %v184 = vpop.f32.mrf.mxu0
  %v185 = vadd.f32 %v61, %v184
  %186 = vdwg.mxu0
  %v187 = vpack.c.bf16 %v183, %v179
  %v188 = vpack.c.bf16 %v185, %v181
  %v189 = vmax.bf16 %v187, 0
  %v190 = vmax.bf16 %v188, 0
  %v191 = vld [vmem:[%s3] sm:$0xf]
  %v192 = vld [vmem:[%s3 + $0x4] sm:$0xf]
  %v193 = vld [vmem:[%s3 + $0x8] sm:$0xf]
  %v194 = vld [vmem:[%s3 + $0xc] sm:$0xf]
  %v195 = vld [vmem:[%s3 + $0x10] sm:$0xf]
  %v196 = vld [vmem:[%s3 + $0x14] sm:$0xf]
  %v197 = vld [vmem:[%s3 + $0x18] sm:$0xf]
  %v198 = vld [vmem:[%s3 + $0x1c] sm:$0xf]
  %v199 = vld [vmem:[%s3 + $0x20] sm:$0xf]
  %v200 = vld [vmem:[%s3 + $0x24] sm:$0xf]
  %v201 = vld [vmem:[%s3 + $0x28] sm:$0xf]
  %v202 = vld [vmem:[%s3 + $0x2c] sm:$0xf]
  %v203 = vld [vmem:[%s3 + $0x30] sm:$0xf]
  %v204 = vld [vmem:[%s3 + $0x34] sm:$0xf]
  %v205 = vld [vmem:[%s3 + $0x38] sm:$0xf]
  %v206 = vld [vmem:[%s3 + $0x3c] sm:$0xf]
  %v207 = vld [vmem:[%s3 + $0x40] sm:$0xf]
  %v208 = vld [vmem:[%s3 + $0x44] sm:$0xf]
  %v209 = vld [vmem:[%s3 + $0x48] sm:$0xf]
  %v210 = vld [vmem:[%s3 + $0x4c] sm:$0xf]
  %v211 = vld [vmem:[%s3 + $0x50] sm:$0xf]
  %v212 = vld [vmem:[%s3 + $0x54] sm:$0xf]
  %v213 = vld [vmem:[%s3 + $0x58] sm:$0xf]
  %v214 = vld [vmem:[%s3 + $0x5c] sm:$0xf]
  %v215 = vld [vmem:[%s3 + $0x60] sm:$0xf]
  %v216 = vld [vmem:[%s3 + $0x64] sm:$0xf]
  %v217 = vld [vmem:[%s3 + $0x68] sm:$0xf]
  %v218 = vld [vmem:[%s3 + $0x6c] sm:$0xf]
  %v219 = vld [vmem:[%s3 + $0x70] sm:$0xf]
  %v220 = vld [vmem:[%s3 + $0x74] sm:$0xf]
  %v221 = vld [vmem:[%s3 + $0x78] sm:$0xf]
  %v222 = vld [vmem:[%s3 + $0x7c] sm:$0xf]
  %v223 = vld [vmem:[%s4] sm:$0x1]
  %v225 = vlaneseq
  %v226 = vshrl.u32 %v225, 7
  %v227 = vsub.s32 0, %v226
  %v228 = vrot.slane %v223, %v227
  %v262 = vunpack.c.l.b16 %v191
  %v263 = vunpack.c.l.b16 %v192
  %v264 = vunpack.c.l.b16 %v193
  %v265 = vunpack.c.l.b16 %v194
  %v266 = vunpack.c.l.b16 %v195
  %v267 = vunpack.c.l.b16 %v196
  %v268 = vunpack.c.l.b16 %v197
  %v269 = vunpack.c.l.b16 %v198
  %v270 = vunpack.c.l.b16 %v199
  %v271 = vunpack.c.l.b16 %v200
  %v272 = vunpack.c.l.b16 %v201
  %v273 = vunpack.c.l.b16 %v202
  %v274 = vunpack.c.l.b16 %v203
  %v275 = vunpack.c.l.b16 %v204
  %v276 = vunpack.c.l.b16 %v205
  %v277 = vunpack.c.l.b16 %v206
  %v278 = vunpack.c.l.b16 %v207
  %v279 = vunpack.c.l.b16 %v208
  %v280 = vunpack.c.l.b16 %v209
  %v281 = vunpack.c.l.b16 %v210
  %v282 = vunpack.c.l.b16 %v211
  %v283 = vunpack.c.l.b16 %v212
  %v284 = vunpack.c.l.b16 %v213
  %v285 = vunpack.c.l.b16 %v214
  %v286 = vunpack.c.l.b16 %v215
  %v287 = vunpack.c.l.b16 %v216
  %v288 = vunpack.c.l.b16 %v217
  %v289 = vunpack.c.l.b16 %v218
  %v290 = vunpack.c.l.b16 %v219
  %v291 = vunpack.c.l.b16 %v220
  %v292 = vunpack.c.l.b16 %v221
  %v293 = vunpack.c.l.b16 %v222
  %v294 = vpack.c.b16 %v263, %v262
  %v295 = vpack.c.b16 %v265, %v264
  %v296 = vpack.c.b16 %v267, %v266
  %v297 = vpack.c.b16 %v269, %v268
  %v298 = vpack.c.b16 %v271, %v270
  %v299 = vpack.c.b16 %v273, %v272
  %v300 = vpack.c.b16 %v275, %v274
  %v301 = vpack.c.b16 %v277, %v276
  %v302 = vpack.c.b16 %v279, %v278
  %v303 = vpack.c.b16 %v281, %v280
  %v304 = vpack.c.b16 %v283, %v282
  %v305 = vpack.c.b16 %v285, %v284
  %v306 = vpack.c.b16 %v287, %v286
  %v307 = vpack.c.b16 %v289, %v288
  %v308 = vpack.c.b16 %v291, %v290
  %v309 = vpack.c.b16 %v293, %v292
  %326 = vmatprep.subr.bf16.mxu0 0
  %327 = vmatpush1.bf16.msra.mxu0 %v301
  %328 = vmatprep.subr.bf16.mxu0 0
  %329 = vmatpush1.bf16.msra.mxu0 %v300
  %330 = vmatprep.subr.bf16.mxu0 0
  %331 = vmatpush1.bf16.msra.mxu0 %v299
  %332 = vmatprep.subr.bf16.mxu0 0
  %333 = vmatpush1.bf16.msra.mxu0 %v298
  %334 = vmatprep.subr.bf16.mxu0 0
  %335 = vmatpush1.bf16.msra.mxu0 %v297
  %336 = vmatprep.subr.bf16.mxu0 0
  %337 = vmatpush1.bf16.msra.mxu0 %v296
  %338 = vmatprep.subr.bf16.mxu0 0
  %339 = vmatpush1.bf16.msra.mxu0 %v295
  %340 = vmatprep.subr.bf16.mxu0 0
  %341 = vmatpush1.bf16.msra.mxu0 %v294
  %342 = vmatprep.subr.bf16.mxu0 0
  %343 = vmatpush2.bf16.msra.mxu0 %v309
  %344 = vmatprep.subr.bf16.mxu0 0
  %345 = vmatpush2.bf16.msra.mxu0 %v308
  %346 = vmatprep.subr.bf16.mxu0 0
  %347 = vmatpush2.bf16.msra.mxu0 %v307
  %348 = vmatprep.subr.bf16.mxu0 0
  %349 = vmatpush2.bf16.msra.mxu0 %v306
  %350 = vmatprep.subr.bf16.mxu0 0
  %351 = vmatpush2.bf16.msra.mxu0 %v305
  %352 = vmatprep.subr.bf16.mxu0 0
  %353 = vmatpush2.bf16.msra.mxu0 %v304
  %354 = vmatprep.subr.bf16.mxu0 0
  %355 = vmatpush2.bf16.msra.mxu0 %v303
  %356 = vmatprep.subr.bf16.mxu0 0
  %357 = vmatpush2.bf16.msra.mxu0 %v302
  %358 = vmatprep.mubr.bf16.mxu0 %v190
  %359 = vmatmul.mubr.bf16.gmra.mxu0 %v189
  %v360 = vpop.f32.mrf.mxu0
  %v361 = vadd.f32 %v228, %v360
  %v362 = vpop.f32.mrf.mxu0
  %v363 = vpop.f32.mrf.mxu0
  %v364 = vadd.f32 %v228, %v363
  %v365 = vpop.f32.mrf.mxu0
  %366 = vdwg.mxu0
  %v367 = vpack.c.bf16 %v364, %v361
  %v368 = vmax.bf16 %v367, 0
  %v369 = vld [vmem:[%s5] sm:$0xf]
  %v370 = vld [vmem:[%s5 + $0x4] sm:$0xf]
  %v371 = vld [vmem:[%s5 + $0x8] sm:$0xf]
  %v372 = vld [vmem:[%s5 + $0xc] sm:$0xf]
  %v373 = vld [vmem:[%s5 + $0x10] sm:$0xf]
  %v374 = vld [vmem:[%s5 + $0x14] sm:$0xf]
  %v375 = vld [vmem:[%s5 + $0x18] sm:$0xf]
  %v376 = vld [vmem:[%s5 + $0x1c] sm:$0xf]
  %v377 = vld [vmem:[%s5 + $0x20] sm:$0xf]
  %v378 = vld [vmem:[%s5 + $0x24] sm:$0xf]
  %v379 = vld [vmem:[%s5 + $0x28] sm:$0xf]
  %v380 = vld [vmem:[%s5 + $0x2c] sm:$0xf]
  %v381 = vld [vmem:[%s5 + $0x30] sm:$0xf]
  %v382 = vld [vmem:[%s5 + $0x34] sm:$0xf]
  %v383 = vld [vmem:[%s5 + $0x38] sm:$0xf]
  %v384 = vld [vmem:[%s5 + $0x3c] sm:$0xf]
  %v385 = vld [vmem:[%s6] sm:$0x1]
  %v387 = vlaneseq
  %v388 = vshrl.u32 %v387, 7
  %v389 = vsub.s32 0, %v388
  %v390 = vrot.slane %v385, %v389
  %v408 = vunpack.c.l.b16 %v369
  %v409 = vunpack.c.l.b16 %v370
  %v410 = vunpack.c.l.b16 %v371
  %v411 = vunpack.c.l.b16 %v372
  %v412 = vunpack.c.l.b16 %v373
  %v413 = vunpack.c.l.b16 %v374
  %v414 = vunpack.c.l.b16 %v375
  %v415 = vunpack.c.l.b16 %v376
  %v416 = vunpack.c.l.b16 %v377
  %v417 = vunpack.c.l.b16 %v378
  %v418 = vunpack.c.l.b16 %v379
  %v419 = vunpack.c.l.b16 %v380
  %v420 = vunpack.c.l.b16 %v381
  %v421 = vunpack.c.l.b16 %v382
  %v422 = vunpack.c.l.b16 %v383
  %v423 = vunpack.c.l.b16 %v384
  %v424 = vpack.c.b16 %v409, %v408
  %v425 = vpack.c.b16 %v411, %v410
  %v426 = vpack.c.b16 %v413, %v412
  %v427 = vpack.c.b16 %v415, %v414
  %v428 = vpack.c.b16 %v417, %v416
  %v429 = vpack.c.b16 %v419, %v418
  %v430 = vpack.c.b16 %v421, %v420
  %v431 = vpack.c.b16 %v423, %v422
  %440 = vmatprep.subr.bf16.mxu0 0
  %441 = vmatpush1.bf16.msra.mxu0 %v431
  %442 = vmatprep.subr.bf16.mxu0 0
  %443 = vmatpush1.bf16.msra.mxu0 %v430
  %444 = vmatprep.subr.bf16.mxu0 0
  %445 = vmatpush1.bf16.msra.mxu0 %v429
  %446 = vmatprep.subr.bf16.mxu0 0
  %447 = vmatpush1.bf16.msra.mxu0 %v428
  %448 = vmatprep.subr.bf16.mxu0 0
  %449 = vmatpush1.bf16.msra.mxu0 %v427
  %450 = vmatprep.subr.bf16.mxu0 0
  %451 = vmatpush1.bf16.msra.mxu0 %v426
  %452 = vmatprep.subr.bf16.mxu0 0
  %453 = vmatpush1.bf16.msra.mxu0 %v425
  %454 = vmatprep.subr.bf16.mxu0 0
  %455 = vmatpush1.bf16.msra.mxu0 %v424
  %456 = vmatprep.subr.bf16.mxu0 0
  %457 = vmatpush2.bf16.msra.mxu0 0
  %458 = vmatprep.subr.bf16.mxu0 0
  %459 = vmatpush2.bf16.msra.mxu0 0
  %460 = vmatprep.subr.bf16.mxu0 0
  %461 = vmatpush2.bf16.msra.mxu0 0
  %462 = vmatprep.subr.bf16.mxu0 0
  %463 = vmatpush2.bf16.msra.mxu0 0
  %464 = vmatprep.subr.bf16.mxu0 0
  %465 = vmatpush2.bf16.msra.mxu0 0
  %466 = vmatprep.subr.bf16.mxu0 0
  %467 = vmatpush2.bf16.msra.mxu0 0
  %468 = vmatprep.subr.bf16.mxu0 0
  %469 = vmatpush2.bf16.msra.mxu0 0
  %470 = vmatprep.subr.bf16.mxu0 0
  %471 = vmatpush2.bf16.msra.mxu0 0
  %472 = vmatprep.mubr.bf16.mxu0 0
  %473 = vmatmul.mubr.bf16.gmra.mxu0 %v368
  %v474 = vpop.f32.mrf.mxu0
  %v475 = vadd.f32 %v390, %v474
  %v476 = vpop.f32.mrf.mxu0
  %v477 = vpop.f32.mrf.mxu0
  %v478 = vadd.f32 %v390, %v477
  %v479 = vpop.f32.mrf.mxu0
  %480 = vdwg.mxu0
  %v481 = vpack.c.bf16 %v478, %v475
  %v482 = vmax.bf16 %v481, 0
  %v483 = vld [vmem:[%s7] sm:$0xf]
  %v484 = vld [vmem:[%s7 + $0x4] sm:$0xf]
  %v485 = vld [vmem:[%s7 + $0x8] sm:$0xf]
  %v486 = vld [vmem:[%s7 + $0xc] sm:$0xf]
  %v487 = vld [vmem:[%s7 + $0x10] sm:$0xf]
  %v488 = vld [vmem:[%s7 + $0x14] sm:$0xf]
  %v489 = vld [vmem:[%s7 + $0x18] sm:$0xf]
  %v490 = vld [vmem:[%s7 + $0x1c] sm:$0xf]
  %v491 = vld [vmem:[%s8] sm:$0x1]
  %v493 = vlaneseq
  %v494 = vshrl.u32 %v493, 7
  %v495 = vsub.s32 0, %v494
  %v496 = vrot.slane %v491, %v495
  %v506 = vunpack.c.l.b16 %v483
  %v507 = vunpack.c.l.b16 %v484
  %v508 = vunpack.c.l.b16 %v485
  %v509 = vunpack.c.l.b16 %v486
  %v510 = vunpack.c.l.b16 %v487
  %v511 = vunpack.c.l.b16 %v488
  %v512 = vunpack.c.l.b16 %v489
  %v513 = vunpack.c.l.b16 %v490
  %v514 = vpack.c.b16 %v507, %v506
  %v515 = vpack.c.b16 %v509, %v508
  %v516 = vpack.c.b16 %v511, %v510
  %v517 = vpack.c.b16 %v513, %v512
  %vm522 = vcmask 523264
  %v524 = vsel %vm522, %v482, 0
  %526 = vmatprep.subr.bf16.mxu0 0
  %527 = vmatpush1.bf16.msra.mxu0 0
  %528 = vmatprep.subr.bf16.mxu0 0
  %529 = vmatpush1.bf16.msra.mxu0 0
  %530 = vmatprep.subr.bf16.mxu0 0
  %531 = vmatpush1.bf16.msra.mxu0 0
  %532 = vmatprep.subr.bf16.mxu0 0
  %533 = vmatpush1.bf16.msra.mxu0 0
  %534 = vmatprep.subr.bf16.mxu0 0
  %535 = vmatpush1.bf16.msra.mxu0 %v517
  %536 = vmatprep.subr.bf16.mxu0 0
  %537 = vmatpush1.bf16.msra.mxu0 %v516
  %538 = vmatprep.subr.bf16.mxu0 0
  %539 = vmatpush1.bf16.msra.mxu0 %v515
  %540 = vmatprep.subr.bf16.mxu0 0
  %541 = vmatpush1.bf16.msra.mxu0 %v514
  %542 = vmatprep.subr.bf16.mxu0 0
  %543 = vmatpush2.bf16.msra.mxu0 0
  %544 = vmatprep.subr.bf16.mxu0 0
  %545 = vmatpush2.bf16.msra.mxu0 0
  %546 = vmatprep.subr.bf16.mxu0 0
  %547 = vmatpush2.bf16.msra.mxu0 0
  %548 = vmatprep.subr.bf16.mxu0 0
  %549 = vmatpush2.bf16.msra.mxu0 0
  %550 = vmatprep.subr.bf16.mxu0 0
  %551 = vmatpush2.bf16.msra.mxu0 0
  %552 = vmatprep.subr.bf16.mxu0 0
  %553 = vmatpush2.bf16.msra.mxu0 0
  %554 = vmatprep.subr.bf16.mxu0 0
  %555 = vmatpush2.bf16.msra.mxu0 0
  %556 = vmatprep.subr.bf16.mxu0 0
  %557 = vmatpush2.bf16.msra.mxu0 0
  %558 = vmatprep.mubr.bf16.mxu0 0
  %559 = vmatmul.mubr.bf16.gmra.mxu0 %v524
  %v560 = vpop.f32.mrf.mxu0
  %v561 = vadd.f32 %v496, %v560
  %v562 = vpop.f32.mrf.mxu0
  %v563 = vpop.f32.mrf.mxu0
  %v564 = vadd.f32 %v496, %v563
  %v565 = vpop.f32.mrf.mxu0
  %566 = vdwg.mxu0
  %v567 = vpack.c.bf16 %v564, %v561
  %v569 = vunpack.c.l.b16 %v567
  %v570 = vunpack.c.h.b16 %v567
  %v571 = vpack.c.b16 %v569, %v569
  %v572 = vpack.c.b16 %v570, %v570
  %575 = vst [vmem:[%s9] sm:$0xf] %v571
  %576 = vst [vmem:[%s9 + $0x4] sm:$0xf] %v572
  // Predicated region
  $region38: #{classifier_forward.1} parent=0 // pred_check
    _
  $region39: #{classifier_forward.1} parent=0 // pred_check_branch
    %578 = sbr.rel (0) target = $region41
  $region40: #{classifier_forward.1} parent=0 // pred_region
    _
  $region41: #{classifier_forward.1} parent=0 // pred_fallthru
    _
  // Predicated region
  $region42: #{classifier_forward.1} parent=0 // pred_check
    _
  $region43: #{classifier_forward.1} parent=0 // pred_check_branch
    %580 = sbr.rel (0) target = $region45
  $region44: #{classifier_forward.1} parent=0 // pred_region
    _
  $region45: #{classifier_forward.1} parent=0 // pred_fallthru
    _

</llo_original>
